<compile_context>
chip_gen: v5e
topology: v5e:2x2
jax: 0.10.0
libtpu: 0.0.40
codegen_flags: <defaults>
</compile_context>

<pallas_src>
import functools

import jax
import jax.numpy as jnp
from jax.experimental import pallas as pl
from jax.experimental.pallas import tpu as pltpu


def _round_up(x, m):
    return (x + m - 1) // m * m


def _mlp_kernel(x_ref, w1_ref, b1_ref, w2_ref, b2_ref, o_ref):
    # f32 -> bf16 cast in-kernel (cheap VPU work) instead of a padded bf16
    # copy of x in HBM every call.
    x = x_ref[...].astype(jnp.bfloat16)
    # Layer 1: (TB, D) @ (D, H) on the MXU, f32 accumulate.
    h = jnp.dot(x, w1_ref[...], preferred_element_type=jnp.float32)
    # Bias + ReLU in f32 on the VPU (v5e-safe: no bf16 VPU path there).
    h = jnp.maximum(h + b1_ref[...], 0.0)
    # Layer 2: cast activation to bf16 for the MXU, accumulate in f32.
    out = jnp.dot(h.astype(jnp.bfloat16), w2_ref[...],
                  preferred_element_type=jnp.float32)
    o_ref[...] = (out + b2_ref[...]).astype(o_ref.dtype)


def prepare_params(w1, b1, w2, b2):
    """Pad/cast the weights ONCE (outside the DQN inner loop) and cache.

    w1: [D_in, H]; b1: [.., H]; w2: [H, A]; b2: [.., A]
    Returns (w1p bf16 [D_in,H], b1p f32 [1,H], w2p bf16 [H,A_pad], b2p f32 [1,A_pad]).
    """
    D_in, H = w1.shape
    H2, A = w2.shape
    assert H == H2
    A_pad = _round_up(max(A, 128), 128)          # lane-dense (unmasked vst) output
    w1p = w1.astype(jnp.bfloat16)                # K dim left at D_in (MXU pads internally)
    b1p = b1.reshape(1, H).astype(jnp.float32)
    w2p = jnp.zeros((H, A_pad), jnp.bfloat16).at[:, :A].set(w2.astype(jnp.bfloat16))
    b2p = jnp.zeros((1, A_pad), jnp.float32).at[:, :A].set(
        b2.reshape(1, A).astype(jnp.float32))
    return w1p, b1p, w2p, b2p


def _choose_batch_tiling(B, block_b):
    """Pick (TB, B_pad): TB 128-aligned (or the whole sublane-rounded batch)."""
    B8 = _round_up(B, 8)
    tb_cap = max(128, (block_b // 128) * 128)    # 128-aligned tile cap
    if B8 <= 256:
        return B8, B8                            # tiny batch: one fat step
    if B8 <= tb_cap:
        # Whole batch fits in one tile: use 2 even 128-aligned steps so the
        # "parallel" batch axis is actually sharded across both TCs on v7x.
        TB = _round_up((B8 + 1) // 2, 128)
        return TB, 2 * TB
    TB = tb_cap
    return TB, _round_up(B8, TB)


@functools.partial(jax.jit, static_argnames=("num_actions", "block_b", "out_dtype"))
def simple_network_forward(x, params, num_actions, *, block_b=1024,
                           out_dtype=jnp.float32):
    """LazyLinear(256) -> ReLU -> LazyLinear(num_actions) forward.

    x: [B, D_in] float; params from prepare_params(). Returns [B, num_actions].
    """
    w1p, b1p, w2p, b2p = params
    B, D_in = x.shape
    D_in_w, H = w1p.shape
    H2, A_pad = w2p.shape
    assert D_in == D_in_w and H == H2 and num_actions <= A_pad

    TB, B_pad = _choose_batch_tiling(B, block_b)
    grid = (B_pad // TB,)

    x = x.astype(jnp.float32)
    xp = x if B_pad == B else jnp.pad(x, ((0, B_pad - B), (0, 0)))

    out_isz = jnp.dtype(out_dtype).itemsize
    # Explicit VMEM budget: double-buffered x/out streams, resident weights
    # (2 pipeline buffers each, fetched once due to constant index_map), the
    # TBxH f32 hidden activation plus its bf16 MXU copy, and the f32 biases.
    vmem_bytes = (
        2 * TB * D_in * 4                        # x tiles, f32, double-buffered
        + 2 * TB * A_pad * out_isz               # out tiles, double-buffered
        + TB * H * (4 + 2)                       # hidden act f32 + bf16 copy
        + 2 * (D_in * H + H * A_pad) * 2         # bf16 weights (x2 buffers)
        + 2 * 2 * (H + A_pad) * 4                # f32 biases (x2 buffers)
    )
    vmem_limit = int(min(max(2 * vmem_bytes, 8 << 20), 64 << 20))

    cost = pl.CostEstimate(
        flops=2 * B_pad * (D_in * H + H * A_pad),
        transcendentals=0,
        bytes_accessed=(xp.size * 4 + w1p.size * 2 + w2p.size * 2
                        + (b1p.size + b2p.size) * 4 + B_pad * A_pad * out_isz),
    )

    out = pl.pallas_call(
        _mlp_kernel,
        out_shape=jax.ShapeDtypeStruct((B_pad, A_pad), out_dtype),
        grid=grid,
        in_specs=[
            pl.BlockSpec((TB, D_in), lambda i: (i, 0)),   # x: streamed over batch
            pl.BlockSpec((D_in, H), lambda i: (0, 0)),    # w1: VMEM-resident
            pl.BlockSpec((1, H), lambda i: (0, 0)),       # b1
            pl.BlockSpec((H, A_pad), lambda i: (0, 0)),   # w2
            pl.BlockSpec((1, A_pad), lambda i: (0, 0)),   # b2
        ],
        out_specs=pl.BlockSpec((TB, A_pad), lambda i: (i, 0)),
        compiler_params=pltpu.CompilerParams(
            dimension_semantics=("parallel",),   # shard batch across TCs on v7x
            vmem_limit_bytes=vmem_limit,
        ),
        cost_estimate=cost,
    )(xp, w1p, b1p, w2p, b2p)

    return out[:B, :num_actions]


def init_params(key, in_features, hidden, num_actions):
    """Kaiming-uniform-ish init, like torch.nn.Linear defaults."""
    k1, k2, k3, k4 = jax.random.split(key, 4)
    bound1 = 1.0 / jnp.sqrt(in_features)
    bound2 = 1.0 / jnp.sqrt(hidden)
    w1 = jax.random.uniform(k1, (in_features, hidden), jnp.float32, -bound1, bound1)
    b1 = jax.random.uniform(k2, (1, hidden), jnp.float32, -bound1, bound1)
    w2 = jax.random.uniform(k3, (hidden, num_actions), jnp.float32, -bound2, bound2)
    b2 = jax.random.uniform(k4, (1, num_actions), jnp.float32, -bound2, bound2)
    return w1, b1, w2, b2


if __name__ == "__main__":
    D_IN = 48        # input feature dim (LazyLinear infers this from x)
    HIDDEN = 256     # fixed by the module
    NUM_ACTIONS = 4

    key = jax.random.PRNGKey(0)
    kx1, kx2, kx3, kp = jax.random.split(key, 4)
    w1, b1, w2, b2 = init_params(kp, D_IN, HIDDEN, NUM_ACTIONS)
    params = prepare_params(w1, b1, w2, b2)   # pad/cast ONCE, reused every call

    def reference_bf16(x):
        # Matches kernel semantics: bf16 MXU inputs, f32 accumulate/bias.
        h = jnp.maximum(
            jnp.dot(x.astype(jnp.bfloat16), w1.astype(jnp.bfloat16),
                    preferred_element_type=jnp.float32) + b1, 0.0)
        return jnp.dot(h.astype(jnp.bfloat16), w2.astype(jnp.bfloat16),
                       preferred_element_type=jnp.float32) + b2

    # 1) Tiny batch: single-step grid (TB = 48).
    x = jax.random.normal(kx1, (48, D_IN), jnp.float32)
    out = simple_network_forward(x, params, num_actions=NUM_ACTIONS)
    jax.block_until_ready(out)
    assert out.shape == (48, NUM_ACTIONS)
    assert jnp.allclose(out, reference_bf16(x), atol=1e-3, rtol=1e-3)
    ref_f32 = jnp.maximum(x @ w1 + b1, 0.0) @ w2 + b2
    assert jnp.allclose(out, ref_f32, atol=5e-2, rtol=5e-2)

    # 2) Medium batch: even 2-step split (TB = 256, grid=(2,)) -> both TCs on v7x.
    x2 = jax.random.normal(kx2, (512, D_IN), jnp.float32)
    out2 = simple_network_forward(x2, params, num_actions=NUM_ACTIONS)
    jax.block_until_ready(out2)
    assert out2.shape == (512, NUM_ACTIONS)
    assert jnp.allclose(out2, reference_bf16(x2), atol=1e-3, rtol=1e-3)

    # 3) Non-divisible batch: 128-aligned tiles with masked-off padded rows
    #    (TB = 128, grid=(3,)).
    x3 = jax.random.normal(kx3, (300, D_IN), jnp.float32)
    out3 = simple_network_forward(x3, params, num_actions=NUM_ACTIONS, block_b=128)
    jax.block_until_ready(out3)
    assert out3.shape == (300, NUM_ACTIONS)
    assert jnp.allclose(out3, reference_bf16(x3), atol=1e-3, rtol=1e-3)

    print("KERNEL_OK")
</pallas_src>

<mosaic_0001>
module attributes {stable_mosaic.version = 11 : i64} {
  func.func @_mlp_kernel(%arg0: i32, %arg1: memref<48x48xf32, #tpu.memory_space<vmem>>, %arg2: memref<48x256xbf16, #tpu.memory_space<vmem>>, %arg3: memref<1x256xf32, #tpu.memory_space<vmem>>, %arg4: memref<256x128xbf16, #tpu.memory_space<vmem>>, %arg5: memref<1x128xf32, #tpu.memory_space<vmem>>, %arg6: memref<48x128xf32, #tpu.memory_space<vmem>>) attributes {dimension_semantics = [#tpu.dimension_semantics<parallel>], iteration_bounds = array<i64: 1>, scalar_prefetch = 0 : i64, scratch_operands = 0 : i64, tpu.core_type = #tpu.core_type<tc>, window_params = [{transform_indices = @transform_0, window_bounds = array<i64: 48, 48>}, {pipeline_mode = #tpu.pipeline_mode<synchronous>, transform_indices = @transform_1, window_bounds = array<i64: 48, 256>}, {pipeline_mode = #tpu.pipeline_mode<synchronous>, transform_indices = @transform_2, window_bounds = array<i64: 1, 256>}, {pipeline_mode = #tpu.pipeline_mode<synchronous>, transform_indices = @transform_3, window_bounds = array<i64: 256, 128>}, {pipeline_mode = #tpu.pipeline_mode<synchronous>, transform_indices = @transform_4, window_bounds = array<i64: 1, 128>}, {transform_indices = @transform_5, window_bounds = array<i64: 48, 128>}]} {
    %c0 = arith.constant 0 : index
    %c0_0 = arith.constant 0 : index
    %0 = vector.load %arg1[%c0, %c0_0] : memref<48x48xf32, #tpu.memory_space<vmem>>, vector<48x48xf32>
    %1 = arith.truncf %0 : vector<48x48xf32> to vector<48x48xbf16>
    %c0_1 = arith.constant 0 : index
    %c0_2 = arith.constant 0 : index
    %2 = vector.load %arg2[%c0_1, %c0_2] : memref<48x256xbf16, #tpu.memory_space<vmem>>, vector<48x256xbf16>
    %cst = arith.constant dense<0.000000e+00> : vector<48x256xf32>
    %3 = tpu.matmul %1, %2, %cst {dimension_numbers = #tpu.dot_dimension_numbers<[1], [0], [0], [1], [0, 0, 1, 1], [], []>} : vector<48x48xbf16>, vector<48x256xbf16>, vector<48x256xf32> -> vector<48x256xf32>
    %c0_3 = arith.constant 0 : index
    %c0_4 = arith.constant 0 : index
    %4 = vector.load %arg3[%c0_3, %c0_4] : memref<1x256xf32, #tpu.memory_space<vmem>>, vector<1x256xf32>
    %5 = vector.broadcast %4 : vector<1x256xf32> to vector<48x256xf32>
    %6 = arith.addf %3, %5 : vector<48x256xf32>
    %cst_5 = arith.constant 0.000000e+00 : f32
    %7 = vector.broadcast %cst_5 : f32 to vector<48x256xf32>
    %8 = arith.maximumf %6, %7 : vector<48x256xf32>
    %9 = arith.truncf %8 : vector<48x256xf32> to vector<48x256xbf16>
    %c0_6 = arith.constant 0 : index
    %c0_7 = arith.constant 0 : index
    %10 = vector.load %arg4[%c0_6, %c0_7] : memref<256x128xbf16, #tpu.memory_space<vmem>>, vector<256x128xbf16>
    %cst_8 = arith.constant dense<0.000000e+00> : vector<48x128xf32>
    %11 = tpu.matmul %9, %10, %cst_8 {dimension_numbers = #tpu.dot_dimension_numbers<[1], [0], [0], [1], [0, 0, 1, 1], [], []>} : vector<48x256xbf16>, vector<256x128xbf16>, vector<48x128xf32> -> vector<48x128xf32>
    %c0_9 = arith.constant 0 : index
    %c0_10 = arith.constant 0 : index
    %12 = vector.load %arg5[%c0_9, %c0_10] : memref<1x128xf32, #tpu.memory_space<vmem>>, vector<1x128xf32>
    %13 = vector.broadcast %12 : vector<1x128xf32> to vector<48x128xf32>
    %14 = arith.addf %11, %13 : vector<48x128xf32>
    %c0_11 = arith.constant 0 : index
    %c0_12 = arith.constant 0 : index
    %15 = vector.load %arg6[%c0_11, %c0_12] : memref<48x128xf32, #tpu.memory_space<vmem>>, vector<48x128xf32>
    tpu.vector_store %arg6[%c0_11, %c0_12], %14 {strides = array<i32>} : memref<48x128xf32, #tpu.memory_space<vmem>>, vector<48x128xf32>,
    return
  }
  func.func @transform_0(%arg0: i32) -> (i32, i32) {
    %c0_i32 = arith.constant 0 : i32
    %c0_i32_0 = arith.constant 0 : i32
    return %arg0, %c0_i32 : i32, i32
  }
  func.func @transform_1(%arg0: i32) -> (i32, i32) {
    %c0_i32 = arith.constant 0 : i32
    %c0_i32_0 = arith.constant 0 : i32
    %c0_i32_1 = arith.constant 0 : i32
    return %c0_i32, %c0_i32_0 : i32, i32
  }
  func.func @transform_2(%arg0: i32) -> (i32, i32) {
    %c0_i32 = arith.constant 0 : i32
    %c0_i32_0 = arith.constant 0 : i32
    %c0_i32_1 = arith.constant 0 : i32
    return %c0_i32, %c0_i32_0 : i32, i32
  }
  func.func @transform_3(%arg0: i32) -> (i32, i32) {
    %c0_i32 = arith.constant 0 : i32
    %c0_i32_0 = arith.constant 0 : i32
    %c0_i32_1 = arith.constant 0 : i32
    return %c0_i32, %c0_i32_0 : i32, i32
  }
  func.func @transform_4(%arg0: i32) -> (i32, i32) {
    %c0_i32 = arith.constant 0 : i32
    %c0_i32_0 = arith.constant 0 : i32
    %c0_i32_1 = arith.constant 0 : i32
    return %c0_i32, %c0_i32_0 : i32, i32
  }
  func.func @transform_5(%arg0: i32) -> (i32, i32) {
    %c0_i32 = arith.constant 0 : i32
    %c0_i32_0 = arith.constant 0 : i32
    return %arg0, %c0_i32 : i32, i32
  }
}

</mosaic_0001>

<llo_original>
// kernel: simple_network_forward.1
$region0: #{simple_network_forward.1}
  #allocation0 [shape = 'u32[]', space=smem, size = 0x4, offset = 0x4, fixed_abs, tag = 'smem constant byte address 0x4 - core index']
  #allocation1 [shape = 'u32[72,128]{1,0:T(1,128)}', space=vmem, size = 0x9000, scoped, tag = 'internal scratch']
  %s0 = inlined_call_operand.hbm [shape: f32[48,48], index: 0, kind: input, shape index: {}]
  %s1 = inlined_call_operand.hbm [shape: bf16[48,256], index: 1, kind: input, shape index: {}]
  %s2 = inlined_call_operand.hbm [shape: f32[1,256], index: 2, kind: input, shape index: {}]
  %s3 = inlined_call_operand.hbm [shape: bf16[256,128], index: 3, kind: input, shape index: {}]
  %s4 = inlined_call_operand.vmem [shape: f32[1,128], index: 4, kind: input, shape index: {}]
  %s5 = inlined_call_operand.vmem [shape: f32[48,128], index: 5, kind: output, shape index: {}]
  %s6 = sld [smem:[#allocation0]]
  $region46: #{simple_network_forward.1} parent=0
    _
  %s8 = ssub.s32 1, %s6
  %s9 = scalar_select 0, %s8, %s6
  $region1: #{simple_network_forward.1} parent=0
    #allocation2 [shape = 'u8[24576]{0}', space=vmem, size = 0x6000, scoped, tag = 'input window, operand 0, single buffered']
    #allocation3 [shape = 's32[1]{0}', space=sflag, size = 0x4, scoped, tag = 'scoped memory for simple_network_forward.1']
    #allocation4 [shape = 'u8[24576]{0}', space=vmem, size = 0x6000, scoped, tag = 'input window, operand 1, single buffered']
    #allocation5 [shape = 's32[1]{0}', space=sflag, size = 0x4, scoped, tag = 'scoped memory for simple_network_forward.1']
    #allocation6 [shape = 'u8[1024]{0}', space=vmem, size = 0x400, scoped, tag = 'input window, operand 2, single buffered']
    #allocation7 [shape = 'u8[65536]{0}', space=vmem, size = 0x10000, scoped, tag = 'input window, operand 3, single buffered']
    #allocation8 [shape = 's32[1]{0}', space=sflag, size = 0x4, scoped, tag = 'scoped memory for simple_network_forward.1']
    %10 = vsyncpa [#allocation3], 0
    %11 = vsyncpa [#allocation5], 0
    %12 = vsyncpa [#allocation8], 0
    // Predicated region
    $region2: #{simple_network_forward.1} parent=1 // pred_check
      _
    $region3: #{simple_network_forward.1} parent=1 // pred_check_branch
      %14 = sbr.rel (0) target = $region5
    $region4: #{simple_network_forward.1} parent=1 // pred_region
      %16 = vsyncadd [#allocation3], 0
      %s17 = sshll.u32 %s0, 4
      %s18 = int_to_ptr.hbm [resolvable:$true] %s17
      %s19 = sshll.u32 [#allocation2], 4
      %s20 = int_to_ptr.vmem [resolvable:$true] %s19
      %25 = dma.hbm_to_vmem [thread:$0]  %s18, 768, %s20, [#allocation3], 128, 128, 8
    $region5: #{simple_network_forward.1} parent=1 // pred_fallthru
      _
    // Predicated region
    $region6: #{simple_network_forward.1} parent=1 // pred_check
      _
    $region7: #{simple_network_forward.1} parent=1 // pred_check_branch
      %27 = sbr.rel (0) target = $region9
    $region8: #{simple_network_forward.1} parent=1 // pred_region
      %29 = vsyncadd [#allocation5], 0
      %s30 = sshll.u32 %s1, 4
      %s31 = int_to_ptr.hbm [resolvable:$true] %s30
      %s32 = sshll.u32 [#allocation4], 4
      %s33 = int_to_ptr.vmem [resolvable:$true] %s32
      %38 = dma.hbm_to_vmem [thread:$0]  %s31, 768, %s33, [#allocation5], 128, 128, 8
    $region9: #{simple_network_forward.1} parent=1 // pred_fallthru
      _
    // Predicated region
    $region10: #{simple_network_forward.1} parent=1 // pred_check
      _
    $region11: #{simple_network_forward.1} parent=1 // pred_check_branch
      %40 = sbr.rel (0) target = $region13
    $region12: #{simple_network_forward.1} parent=1 // pred_region
      %42 = vsyncadd [#allocation5], 0
      %s44 = sshll.u32 %s2, 4
      %s45 = int_to_ptr.hbm [resolvable:$true] %s44
      %s46 = sshll.u32 [#allocation6], 4
      %s47 = int_to_ptr.vmem [resolvable:$true] %s46
      %49 = dma.hbm_to_vmem [thread:$0]  %s45, 32, %s47, [#allocation5]
    $region13: #{simple_network_forward.1} parent=1 // pred_fallthru
      _
    // Predicated region
    $region14: #{simple_network_forward.1} parent=1 // pred_check
      _
    $region15: #{simple_network_forward.1} parent=1 // pred_check_branch
      %51 = sbr.rel (0) target = $region17
    $region16: #{simple_network_forward.1} parent=1 // pred_region
      %53 = vsyncadd [#allocation8], 0
      %s54 = sshll.u32 %s3, 4
      %s55 = int_to_ptr.hbm [resolvable:$true] %s54
      %s56 = sshll.u32 [#allocation7], 4
      %s57 = int_to_ptr.vmem [resolvable:$true] %s56
      %62 = dma.hbm_to_vmem [thread:$0]  %s55, 2048, %s57, [#allocation8], 64, 64, 4
    $region17: #{simple_network_forward.1} parent=1 // pred_fallthru
      _
    // Predicated region
    $region18: #{simple_network_forward.1} parent=1 // pred_check
      _
    $region19: #{simple_network_forward.1} parent=1 // pred_check_branch
      %64 = sbr.rel (0) target = $region21
    $region20: #{simple_network_forward.1} parent=1 // pred_region
      _
    $region21: #{simple_network_forward.1} parent=1 // pred_fallthru
      _
    // Predicated region
    $region22: #{simple_network_forward.1} parent=1 // pred_check
      _
    $region23: #{simple_network_forward.1} parent=1 // pred_check_branch
      %66 = sbr.rel (0) target = $region25
    $region24: #{simple_network_forward.1} parent=1 // pred_region
      %68 = dma.done [#allocation3], 768
    $region25: #{simple_network_forward.1} parent=1 // pred_fallthru
      _
    // Predicated region
    $region26: #{simple_network_forward.1} parent=1 // pred_check
      _
    $region27: #{simple_network_forward.1} parent=1 // pred_check_branch
      %70 = sbr.rel (0) target = $region29
    $region28: #{simple_network_forward.1} parent=1 // pred_region
      %72 = dma.done [#allocation5], 768
    $region29: #{simple_network_forward.1} parent=1 // pred_fallthru
      _
    // Predicated region
    $region30: #{simple_network_forward.1} parent=1 // pred_check
      _
    $region31: #{simple_network_forward.1} parent=1 // pred_check_branch
      %74 = sbr.rel (0) target = $region33
    $region32: #{simple_network_forward.1} parent=1 // pred_region
      %76 = dma.done [#allocation5], 32
    $region33: #{simple_network_forward.1} parent=1 // pred_fallthru
      _
    // Predicated region
    $region34: #{simple_network_forward.1} parent=1 // pred_check
      _
    $region35: #{simple_network_forward.1} parent=1 // pred_check_branch
      %78 = sbr.rel (0) target = $region37
    $region36: #{simple_network_forward.1} parent=1 // pred_region
      %80 = dma.done [#allocation8], 2048
    $region37: #{simple_network_forward.1} parent=1 // pred_fallthru
      _
    %v82 = vld [vmem:[#allocation2] sm:$0xff]
    %v83 = vld [vmem:[#allocation2 + $0x8] sm:$0xff]
    %v84 = vld [vmem:[#allocation2 + $0x10] sm:$0xff]
    %v85 = vld [vmem:[#allocation2 + $0x18] sm:$0xff]
    %v86 = vld [vmem:[#allocation2 + $0x20] sm:$0xff]
    %v87 = vld [vmem:[#allocation2 + $0x28] sm:$0xff]
    %v88 = vpack.c.bf16 %v83, %v82
    %v89 = vpack.c.bf16 %v85, %v84
    %v90 = vpack.c.bf16 %v87, %v86
    %v91 = vld [vmem:[#allocation4] sm:$0xff]
    %v92 = vld [vmem:[#allocation4 + $0x8] sm:$0xff]
    %v93 = vld [vmem:[#allocation4 + $0x10] sm:$0xff]
    %v94 = vld [vmem:[#allocation4 + $0x18] sm:$0xff]
    %v95 = vld [vmem:[#allocation4 + $0x20] sm:$0xff]
    %v96 = vld [vmem:[#allocation4 + $0x28] sm:$0xff]
    %v97 = vld [vmem:[#allocation6] sm:$0x3]
    %v99 = vperm.slane %v97, 0
    %v100 = vperm.slane %v97, 1
    %v109 = vunpack.c.l.b16 %v91
    %v110 = vunpack.c.h.b16 %v91
    %v111 = vunpack.c.l.b16 %v92
    %v112 = vunpack.c.h.b16 %v92
    %v113 = vunpack.c.l.b16 %v93
    %v114 = vunpack.c.h.b16 %v93
    %v115 = vunpack.c.l.b16 %v94
    %v116 = vunpack.c.h.b16 %v94
    %v117 = vunpack.c.l.b16 %v95
    %v118 = vunpack.c.h.b16 %v95
    %v119 = vunpack.c.l.b16 %v96
    %v120 = vunpack.c.h.b16 %v96
    %v121 = vpack.c.b16 %v111, %v109
    %v122 = vpack.c.b16 %v112, %v110
    %v123 = vpack.c.b16 %v115, %v113
    %v124 = vpack.c.b16 %v116, %v114
    %v125 = vpack.c.b16 %v119, %v117
    %v126 = vpack.c.b16 %v120, %v118
    %vm133 = vcmask 392192
    %v135 = vsel %vm133, %v88, 0
    %v138 = vsel %vm133, %v89, 0
    %v141 = vsel %vm133, %v90, 0
    %143 = vmatpush.bf16.msra.mxu0 0
    %144 = vmatpush.bf16.msra.mxu0 0
    %145 = vmatpush.bf16.msra.mxu0 0
    %146 = vmatpush.bf16.msra.mxu0 0
    %147 = vmatpush.bf16.msra.mxu0 0
    %148 = vmatpush.bf16.msra.mxu0 %v125
    %149 = vmatpush.bf16.msra.mxu0 %v123
    %150 = vmatpush.bf16.msra.mxu0 %v121
    %151 = vmatmul.bf16.gmra.mxu0 %v135
    %v152 = vpop.f32.mrf.mxu0
    %v153 = vadd.f32 %v99, %v152
    %v154 = vpop.f32.mrf.mxu0
    %v155 = vadd.f32 %v99, %v154
    %156 = vmatmul.bf16.gmra.mxu0 %v138
    %v157 = vpop.f32.mrf.mxu0
    %v158 = vadd.f32 %v99, %v157
    %v159 = vpop.f32.mrf.mxu0
    %v160 = vadd.f32 %v99, %v159
    %161 = vmatmul.bf16.gmra.mxu0 %v141
    %v162 = vpop.f32.mrf.mxu0
    %v163 = vadd.f32 %v99, %v162
    %v164 = vpop.f32.mrf.mxu0
    %v165 = vadd.f32 %v99, %v164
    %166 = vdwg.mxu0
    %167 = vmatpush.bf16.msra.mxu0 0
    %168 = vmatpush.bf16.msra.mxu0 0
    %169 = vmatpush.bf16.msra.mxu0 0
    %170 = vmatpush.bf16.msra.mxu0 0
    %171 = vmatpush.bf16.msra.mxu0 0
    %172 = vmatpush.bf16.msra.mxu0 %v126
    %173 = vmatpush.bf16.msra.mxu0 %v124
    %174 = vmatpush.bf16.msra.mxu0 %v122
    %175 = vmatmul.bf16.gmra.mxu0 %v135
    %v176 = vpop.f32.mrf.mxu0
    %v177 = vadd.f32 %v100, %v176
    %v178 = vpop.f32.mrf.mxu0
    %v179 = vadd.f32 %v100, %v178
    %180 = vmatmul.bf16.gmra.mxu0 %v138
    %v181 = vpop.f32.mrf.mxu0
    %v182 = vadd.f32 %v100, %v181
    %v183 = vpop.f32.mrf.mxu0
    %v184 = vadd.f32 %v100, %v183
    %185 = vmatmul.bf16.gmra.mxu0 %v141
    %v186 = vpop.f32.mrf.mxu0
    %v187 = vadd.f32 %v100, %v186
    %v188 = vpop.f32.mrf.mxu0
    %v189 = vadd.f32 %v100, %v188
    %190 = vdwg.mxu0
    %v191 = vmax.f32 %v153, 0.0
    %v192 = vmax.f32 %v177, 0.0
    %v193 = vmax.f32 %v155, 0.0
    %v194 = vmax.f32 %v179, 0.0
    %v195 = vmax.f32 %v158, 0.0
    %v196 = vmax.f32 %v182, 0.0
    %v197 = vmax.f32 %v160, 0.0
    %v198 = vmax.f32 %v184, 0.0
    %v199 = vmax.f32 %v163, 0.0
    %v200 = vmax.f32 %v187, 0.0
    %v201 = vmax.f32 %v165, 0.0
    %v202 = vmax.f32 %v189, 0.0
    %v203 = vpack.c.bf16 %v193, %v191
    %v204 = vpack.c.bf16 %v194, %v192
    %v205 = vpack.c.bf16 %v197, %v195
    %v206 = vpack.c.bf16 %v198, %v196
    %v207 = vpack.c.bf16 %v201, %v199
    %v208 = vpack.c.bf16 %v202, %v200
    %v209 = vld [vmem:[#allocation7] sm:$0xf]
    %v210 = vld [vmem:[#allocation7 + $0x4] sm:$0xf]
    %v211 = vld [vmem:[#allocation7 + $0x8] sm:$0xf]
    %v212 = vld [vmem:[#allocation7 + $0xc] sm:$0xf]
    %v213 = vld [vmem:[#allocation7 + $0x10] sm:$0xf]
    %v214 = vld [vmem:[#allocation7 + $0x14] sm:$0xf]
    %v215 = vld [vmem:[#allocation7 + $0x18] sm:$0xf]
    %v216 = vld [vmem:[#allocation7 + $0x1c] sm:$0xf]
    %v217 = vld [vmem:[#allocation7 + $0x20] sm:$0xf]
    %v218 = vld [vmem:[#allocation7 + $0x24] sm:$0xf]
    %v219 = vld [vmem:[#allocation7 + $0x28] sm:$0xf]
    %v220 = vld [vmem:[#allocation7 + $0x2c] sm:$0xf]
    %v221 = vld [vmem:[#allocation7 + $0x30] sm:$0xf]
    %v222 = vld [vmem:[#allocation7 + $0x34] sm:$0xf]
    %v223 = vld [vmem:[#allocation7 + $0x38] sm:$0xf]
    %v224 = vld [vmem:[#allocation7 + $0x3c] sm:$0xf]
    %v225 = vld [vmem:[#allocation7 + $0x40] sm:$0xf]
    %v226 = vld [vmem:[#allocation7 + $0x44] sm:$0xf]
    %v227 = vld [vmem:[#allocation7 + $0x48] sm:$0xf]
    %v228 = vld [vmem:[#allocation7 + $0x4c] sm:$0xf]
    %v229 = vld [vmem:[#allocation7 + $0x50] sm:$0xf]
    %v230 = vld [vmem:[#allocation7 + $0x54] sm:$0xf]
    %v231 = vld [vmem:[#allocation7 + $0x58] sm:$0xf]
    %v232 = vld [vmem:[#allocation7 + $0x5c] sm:$0xf]
    %v233 = vld [vmem:[#allocation7 + $0x60] sm:$0xf]
    %v234 = vld [vmem:[#allocation7 + $0x64] sm:$0xf]
    %v235 = vld [vmem:[#allocation7 + $0x68] sm:$0xf]
    %v236 = vld [vmem:[#allocation7 + $0x6c] sm:$0xf]
    %v237 = vld [vmem:[#allocation7 + $0x70] sm:$0xf]
    %v238 = vld [vmem:[#allocation7 + $0x74] sm:$0xf]
    %v239 = vld [vmem:[#allocation7 + $0x78] sm:$0xf]
    %v240 = vld [vmem:[#allocation7 + $0x7c] sm:$0xf]
    %v241 = vld [vmem:[%s4] sm:$0x1]
    %v243 = vperm.slane %v241, 0
    %v277 = vunpack.c.l.b16 %v209
    %v278 = vunpack.c.l.b16 %v210
    %v279 = vunpack.c.l.b16 %v211
    %v280 = vunpack.c.l.b16 %v212
    %v281 = vunpack.c.l.b16 %v213
    %v282 = vunpack.c.l.b16 %v214
    %v283 = vunpack.c.l.b16 %v215
    %v284 = vunpack.c.l.b16 %v216
    %v285 = vunpack.c.l.b16 %v217
    %v286 = vunpack.c.l.b16 %v218
    %v287 = vunpack.c.l.b16 %v219
    %v288 = vunpack.c.l.b16 %v220
    %v289 = vunpack.c.l.b16 %v221
    %v290 = vunpack.c.l.b16 %v222
    %v291 = vunpack.c.l.b16 %v223
    %v292 = vunpack.c.l.b16 %v224
    %v293 = vunpack.c.l.b16 %v225
    %v294 = vunpack.c.l.b16 %v226
    %v295 = vunpack.c.l.b16 %v227
    %v296 = vunpack.c.l.b16 %v228
    %v297 = vunpack.c.l.b16 %v229
    %v298 = vunpack.c.l.b16 %v230
    %v299 = vunpack.c.l.b16 %v231
    %v300 = vunpack.c.l.b16 %v232
    %v301 = vunpack.c.l.b16 %v233
    %v302 = vunpack.c.l.b16 %v234
    %v303 = vunpack.c.l.b16 %v235
    %v304 = vunpack.c.l.b16 %v236
    %v305 = vunpack.c.l.b16 %v237
    %v306 = vunpack.c.l.b16 %v238
    %v307 = vunpack.c.l.b16 %v239
    %v308 = vunpack.c.l.b16 %v240
    %v309 = vpack.c.b16 %v278, %v277
    %v310 = vpack.c.b16 %v280, %v279
    %v311 = vpack.c.b16 %v282, %v281
    %v312 = vpack.c.b16 %v284, %v283
    %v313 = vpack.c.b16 %v286, %v285
    %v314 = vpack.c.b16 %v288, %v287
    %v315 = vpack.c.b16 %v290, %v289
    %v316 = vpack.c.b16 %v292, %v291
    %v317 = vpack.c.b16 %v294, %v293
    %v318 = vpack.c.b16 %v296, %v295
    %v319 = vpack.c.b16 %v298, %v297
    %v320 = vpack.c.b16 %v300, %v299
    %v321 = vpack.c.b16 %v302, %v301
    %v322 = vpack.c.b16 %v304, %v303
    %v323 = vpack.c.b16 %v306, %v305
    %v324 = vpack.c.b16 %v308, %v307
    %341 = vmatpush.bf16.msra.mxu0 %v316
    %342 = vmatpush.bf16.msra.mxu0 %v315
    %343 = vmatpush.bf16.msra.mxu0 %v314
    %344 = vmatpush.bf16.msra.mxu0 %v313
    %345 = vmatpush.bf16.msra.mxu0 %v312
    %346 = vmatpush.bf16.msra.mxu0 %v311
    %347 = vmatpush.bf16.msra.mxu0 %v310
    %348 = vmatpush.bf16.msra.mxu0 %v309
    %349 = vmatmul.bf16.gmra.mxu0 %v203
    %v350 = vpop.f32.mrf.mxu0
    %v351 = vadd.f32 %v243, %v350
    %v352 = vpop.f32.mrf.mxu0
    %v353 = vadd.f32 %v243, %v352
    %354 = vmatmul.bf16.gmra.mxu0 %v205
    %v355 = vpop.f32.mrf.mxu0
    %v356 = vadd.f32 %v243, %v355
    %v357 = vpop.f32.mrf.mxu0
    %v358 = vadd.f32 %v243, %v357
    %359 = vmatmul.bf16.gmra.mxu0 %v207
    %v360 = vpop.f32.mrf.mxu0
    %v361 = vadd.f32 %v243, %v360
    %v362 = vpop.f32.mrf.mxu0
    %v363 = vadd.f32 %v243, %v362
    %364 = vdwg.mxu0
    %365 = vmatpush.bf16.msra.mxu0 %v324
    %366 = vmatpush.bf16.msra.mxu0 %v323
    %367 = vmatpush.bf16.msra.mxu0 %v322
    %368 = vmatpush.bf16.msra.mxu0 %v321
    %369 = vmatpush.bf16.msra.mxu0 %v320
    %370 = vmatpush.bf16.msra.mxu0 %v319
    %371 = vmatpush.bf16.msra.mxu0 %v318
    %372 = vmatpush.bf16.msra.mxu0 %v317
    %373 = vmatmul.bf16.gmra.mxu0 %v204
    %v374 = vpop.f32.mrf.mxu0
    %v375 = vadd.f32 %v351, %v374
    %v376 = vpop.f32.mrf.mxu0
    %v377 = vadd.f32 %v353, %v376
    %378 = vmatmul.bf16.gmra.mxu0 %v206
    %v379 = vpop.f32.mrf.mxu0
    %v380 = vadd.f32 %v356, %v379
    %v381 = vpop.f32.mrf.mxu0
    %v382 = vadd.f32 %v358, %v381
    %383 = vmatmul.bf16.gmra.mxu0 %v208
    %v384 = vpop.f32.mrf.mxu0
    %v385 = vadd.f32 %v361, %v384
    %v386 = vpop.f32.mrf.mxu0
    %v387 = vadd.f32 %v363, %v386
    %388 = vdwg.mxu0
    %389 = vst [vmem:[%s5] sm:$0xff] %v375
    %390 = vst [vmem:[%s5 + $0x8] sm:$0xff] %v377
    %391 = vst [vmem:[%s5 + $0x10] sm:$0xff] %v380
    %392 = vst [vmem:[%s5 + $0x18] sm:$0xff] %v382
    %393 = vst [vmem:[%s5 + $0x20] sm:$0xff] %v385
    %394 = vst [vmem:[%s5 + $0x28] sm:$0xff] %v387
    // Predicated region
    $region38: #{simple_network_forward.1} parent=1 // pred_check
      _
    $region39: #{simple_network_forward.1} parent=1 // pred_check_branch
      %396 = sbr.rel (0) target = $region41
    $region40: #{simple_network_forward.1} parent=1 // pred_region
      _
    $region41: #{simple_network_forward.1} parent=1 // pred_fallthru
      _
    // Predicated region
    $region42: #{simple_network_forward.1} parent=1 // pred_check
      _
    $region43: #{simple_network_forward.1} parent=1 // pred_check_branch
      %398 = sbr.rel (0) target = $region45
    $region44: #{simple_network_forward.1} parent=1 // pred_region
      _
    $region45: #{simple_network_forward.1} parent=1 // pred_fallthru
      _
    %399 = vsyncpa [#allocation3], 1
    %400 = vsyncpa [#allocation5], 1
    %401 = vsyncpa [#allocation8], 1

</llo_original>
